<compile_context>
chip_gen: v7x
topology: tpu7x:2x2x1
jax: 0.10.0
libtpu: 0.0.40
codegen_flags: <defaults>
</compile_context>

<pallas_src>
import jax
import jax.numpy as jnp
from jax.experimental import pallas as pl
from jax.experimental.pallas import tpu as pltpu


def _hue_kernel(factor_ref, img_ref, out_ref):
    # factor_ref: SMEM (1,) float32 hue shift (torchvision expects [-0.5, 0.5])
    # img_ref / out_ref: VMEM (BT, 3, TS, L) float tiles, values in [0, 1]

    # Hue shift expressed in "sixths"; +6 keeps h6 comfortably positive.
    shift = factor_ref[0] * 6.0 + 6.0

    r = img_ref[:, 0, :, :].astype(jnp.float32)
    g = img_ref[:, 1, :, :].astype(jnp.float32)
    b = img_ref[:, 2, :, :].astype(jnp.float32)

    # ---- RGB -> (hue, value, chroma) ----
    maxc = jnp.maximum(jnp.maximum(r, g), b)
    minc = jnp.minimum(jnp.minimum(r, g), b)
    cr = maxc - minc                                  # chroma == v * s
    inv_cr = pl.reciprocal(jnp.where(cr == 0.0, 1.0, cr))   # exact, one recip

    max_is_r = maxc == r
    max_is_g = maxc == g
    # torchvision sector formula, already in sixths (range (-1, 5))
    h6 = jnp.where(
        max_is_r, (g - b) * inv_cr,
        jnp.where(max_is_g, 2.0 + (b - r) * inv_cr, 4.0 + (r - g) * inv_cr))

    # ---- hue shift + single wrap (replaces three jnp.mod calls) ----
    h6 = h6 + shift
    h6 = h6 - 6.0 * jnp.floor(h6 * (1.0 / 6.0))       # h6 in [0, 6)

    # ---- branchless HSV -> RGB:  chan = v - chroma * clip(tri(h6), 0, 1) ----
    v = maxc

    def tri_min(a, b_):     # rise / plateau / fall
        return jnp.clip(jnp.minimum(a, b_), 0.0, 1.0)

    def tri_max(a, b_):     # fall / zero / rise (tent wrapped across 0)
        return jnp.clip(jnp.maximum(a, b_), 0.0, 1.0)

    dt = out_ref.dtype
    out_ref[:, 0, :, :] = (v - cr * tri_min(h6 - 1.0, 5.0 - h6)).astype(dt)
    out_ref[:, 1, :, :] = (v - cr * tri_max(1.0 - h6, h6 - 3.0)).astype(dt)
    out_ref[:, 2, :, :] = (v - cr * tri_max(3.0 - h6, h6 - 5.0)).astype(dt)


def random_hue(img_nchw, factor):
    """Apply torchvision-style adjust_hue.

    img_nchw: (N, 3, H, W) float image with values in [0, 1].
    factor:   python float (or jax scalar) hue shift, nominally in [-0.5, 0.5].
    """
    N, C, H, W = img_nchw.shape
    assert C == 3, "adjust_hue expects RGB (3 channels)"
    assert jnp.issubdtype(img_nchw.dtype, jnp.floating), \
        "kernel implements the float path of adjust_hue (values in [0, 1])"
    itemsize = jnp.dtype(img_nchw.dtype).itemsize

    # ---- lane-dense view: fold (H, W) into (S, L) with L a lane multiple ----
    P = H * W
    if P % 128 == 0:
        S, L = P // 128, 128
    else:
        # TODO(synk): H*W not a multiple of 128 -> row-major (H, W) tiling with
        # a lane-masked tail; fine for correctness, slower for tiny widths.
        S, L = H, W
    x = img_nchw.reshape(N, C, S, L)

    # ---- tiling: fixed VMEM budget per block, cdiv grid (no divisor search) --
    blk_target = 3 * 1024 * 1024                       # ~3 MiB per block
    ts_cap = max(8, (blk_target // (C * L * itemsize) // 8) * 8)
    TS = S if S <= ts_cap else ts_cap                  # full dim or 8-aligned
    gs = pl.cdiv(S, TS)

    # Fold several small images per block, but keep >= ~4 total grid steps so
    # both v7x TensorCores get work and the pipeline can double-buffer.
    blk_bytes = C * TS * L * itemsize
    bt_bytes = max(1, blk_target // blk_bytes)
    min_steps = 4
    needed_n_steps = max(1, -(-min_steps // gs))       # ceil(min_steps / gs)
    bt_grid = max(1, N // needed_n_steps)
    BT = int(max(1, min(N, bt_bytes, bt_grid)))
    gn = pl.cdiv(N, BT)

    factor_arr = jnp.asarray(factor, dtype=jnp.float32).reshape(1)

    out = pl.pallas_call(
        _hue_kernel,
        out_shape=jax.ShapeDtypeStruct((N, C, S, L), img_nchw.dtype),
        grid=(gn, gs),
        in_specs=[
            pl.BlockSpec(memory_space=pltpu.MemorySpace.SMEM),             # hue factor
            pl.BlockSpec((BT, C, TS, L), lambda n, s: (n, 0, s, 0)),       # image tile
        ],
        out_specs=pl.BlockSpec((BT, C, TS, L), lambda n, s: (n, 0, s, 0)),
        compiler_params=pltpu.CompilerParams(
            dimension_semantics=("parallel", "parallel"),
            vmem_limit_bytes=32 * 1024 * 1024),
        cost_estimate=pl.CostEstimate(
            flops=50 * N * P,
            transcendentals=N * P,
            bytes_accessed=2 * N * C * P * itemsize),
    )(factor_arr, x)

    return out.reshape(N, C, H, W)


def _adjust_hue_ref(img, factor):
    """Pure-JAX replica of torchvision adjust_hue (float path) for validation."""
    r, g, b = img[:, 0], img[:, 1], img[:, 2]
    maxc = jnp.maximum(jnp.maximum(r, g), b)
    minc = jnp.minimum(jnp.minimum(r, g), b)
    eqc = maxc == minc
    cr = maxc - minc
    ones = jnp.ones_like(maxc)
    s = cr / jnp.where(eqc, ones, maxc)
    cr_div = jnp.where(eqc, ones, cr)
    rc = (maxc - r) / cr_div
    gc = (maxc - g) / cr_div
    bc = (maxc - b) / cr_div
    hr = jnp.where(maxc == r, bc - gc, 0.0)
    hg = jnp.where((maxc == g) & (maxc != r), 2.0 + rc - bc, 0.0)
    hb = jnp.where((maxc != g) & (maxc != r), 4.0 + gc - rc, 0.0)
    h = jnp.mod((hr + hg + hb) / 6.0 + 1.0, 1.0)
    h = jnp.mod(h + factor, 1.0)

    v = maxc
    h6 = h * 6.0
    i = jnp.mod(jnp.floor(h6), 6.0)
    frac = h6 - jnp.floor(h6)
    p = jnp.clip(v * (1.0 - s), 0.0, 1.0)
    q = jnp.clip(v * (1.0 - s * frac), 0.0, 1.0)
    t = jnp.clip(v * (1.0 - s * (1.0 - frac)), 0.0, 1.0)

    def sel(c0, c1, c2, c3, c4, c5):
        return jnp.where(i == 0.0, c0,
               jnp.where(i == 1.0, c1,
               jnp.where(i == 2.0, c2,
               jnp.where(i == 3.0, c3,
               jnp.where(i == 4.0, c4, c5)))))

    r_o = sel(v, q, p, p, t, v)
    g_o = sel(t, v, v, q, p, p)
    b_o = sel(p, p, t, v, v, q)
    return jnp.stack([r_o, g_o, b_o], axis=1).astype(img.dtype)


if __name__ == "__main__":
    key = jax.random.PRNGKey(0)
    k_img, k_factor = jax.random.split(key)

    # NCHW, 3 channels, spatial 16x16, values in [0, 1]
    img = jax.random.uniform(k_img, (2, 3, 16, 16), dtype=jnp.float32)

    # Deterministic stand-in for torch.empty(1).uniform_(-0.2, 0.2).item()
    hue_range = (-0.2, 0.2)
    factor = float(jax.random.uniform(
        k_factor, (), minval=hue_range[0], maxval=hue_range[1]))

    out = jax.block_until_ready(random_hue(img, factor))

    ref = _adjust_hue_ref(img, factor)
    assert out.shape == img.shape and out.dtype == img.dtype
    max_err = float(jnp.max(jnp.abs(out - ref)))
    assert max_err < 1e-4, f"max abs err {max_err}"

    print("KERNEL_OK")
</pallas_src>

<mosaic_0001>
module attributes {stable_mosaic.version = 11 : i64} {
  func.func @_hue_kernel(%arg0: i32, %arg1: i32, %arg2: memref<1xf32, #tpu.memory_space<smem>>, %arg3: memref<1x3x2x128xf32, #tpu.memory_space<vmem>>, %arg4: memref<1x3x2x128xf32, #tpu.memory_space<vmem>>) attributes {dimension_semantics = [#tpu.dimension_semantics<parallel>, #tpu.dimension_semantics<parallel>], iteration_bounds = array<i64: 2, 1>, scalar_prefetch = 0 : i64, scratch_operands = 0 : i64, tpu.core_type = #tpu.core_type<tc>, window_params = [{transform_indices = @transform_0, window_bounds = array<i64: 1>}, {transform_indices = @transform_1, window_bounds = array<i64: 1, 3, 2, 128>}, {transform_indices = @transform_2, window_bounds = array<i64: 1, 3, 2, 128>}]} {
    %c0 = arith.constant 0 : index
    %0 = memref.load %arg2[%c0] : memref<1xf32, #tpu.memory_space<smem>>
    %cst = arith.constant 6.000000e+00 : f32
    %1 = arith.mulf %0, %cst : f32
    %cst_0 = arith.constant 6.000000e+00 : f32
    %2 = arith.addf %1, %cst_0 : f32
    %c0_1 = arith.constant 0 : index
    %c0_2 = arith.constant 0 : index
    %c0_3 = arith.constant 0 : index
    %c0_4 = arith.constant 0 : index
    %3 = vector.load %arg3[%c0_1, %c0_2, %c0_3, %c0_4] : memref<1x3x2x128xf32, #tpu.memory_space<vmem>>, vector<1x1x2x128xf32>
    %4 = vector.shape_cast %3 : vector<1x1x2x128xf32> to vector<1x2x128xf32>
    %c0_5 = arith.constant 0 : index
    %c1 = arith.constant 1 : index
    %c0_6 = arith.constant 0 : index
    %c0_7 = arith.constant 0 : index
    %5 = vector.load %arg3[%c0_5, %c1, %c0_6, %c0_7] : memref<1x3x2x128xf32, #tpu.memory_space<vmem>>, vector<1x1x2x128xf32>
    %6 = vector.shape_cast %5 : vector<1x1x2x128xf32> to vector<1x2x128xf32>
    %c0_8 = arith.constant 0 : index
    %c2 = arith.constant 2 : index
    %c0_9 = arith.constant 0 : index
    %c0_10 = arith.constant 0 : index
    %7 = vector.load %arg3[%c0_8, %c2, %c0_9, %c0_10] : memref<1x3x2x128xf32, #tpu.memory_space<vmem>>, vector<1x1x2x128xf32>
    %8 = vector.shape_cast %7 : vector<1x1x2x128xf32> to vector<1x2x128xf32>
    %9 = arith.maximumf %4, %6 : vector<1x2x128xf32>
    %10 = arith.maximumf %9, %8 : vector<1x2x128xf32>
    %11 = arith.minimumf %4, %6 : vector<1x2x128xf32>
    %12 = arith.minimumf %11, %8 : vector<1x2x128xf32>
    %13 = arith.subf %10, %12 : vector<1x2x128xf32>
    %cst_11 = arith.constant 0.000000e+00 : f32
    %14 = vector.broadcast %cst_11 : f32 to vector<1x2x128xf32>
    %15 = arith.cmpf oeq, %13, %14 : vector<1x2x128xf32>
    %cst_12 = arith.constant 1.000000e+00 : f32
    %16 = vector.broadcast %cst_12 : f32 to vector<1x2x128xf32>
    %17 = arith.select %15, %16, %13 : vector<1x2x128xi1>, vector<1x2x128xf32>
    %18 = tpu.reciprocal %17 : vector<1x2x128xf32> -> vector<1x2x128xf32>
    %19 = arith.cmpf oeq, %10, %4 : vector<1x2x128xf32>
    %20 = arith.cmpf oeq, %10, %6 : vector<1x2x128xf32>
    %21 = arith.subf %6, %8 : vector<1x2x128xf32>
    %22 = arith.mulf %21, %18 : vector<1x2x128xf32>
    %23 = arith.subf %8, %4 : vector<1x2x128xf32>
    %24 = arith.mulf %23, %18 : vector<1x2x128xf32>
    %cst_13 = arith.constant 2.000000e+00 : f32
    %25 = vector.broadcast %cst_13 : f32 to vector<1x2x128xf32>
    %26 = arith.addf %25, %24 : vector<1x2x128xf32>
    %27 = arith.subf %4, %6 : vector<1x2x128xf32>
    %28 = arith.mulf %27, %18 : vector<1x2x128xf32>
    %cst_14 = arith.constant 4.000000e+00 : f32
    %29 = vector.broadcast %cst_14 : f32 to vector<1x2x128xf32>
    %30 = arith.addf %29, %28 : vector<1x2x128xf32>
    %31 = arith.select %20, %26, %30 : vector<1x2x128xi1>, vector<1x2x128xf32>
    %32 = arith.select %19, %22, %31 : vector<1x2x128xi1>, vector<1x2x128xf32>
    %33 = vector.broadcast %2 : f32 to vector<1x2x128xf32>
    %34 = arith.addf %32, %33 : vector<1x2x128xf32>
    %cst_15 = arith.constant 0.166666672 : f32
    %35 = vector.broadcast %cst_15 : f32 to vector<1x2x128xf32>
    %36 = arith.mulf %34, %35 : vector<1x2x128xf32>
    %37 = math.floor %36 : vector<1x2x128xf32>
    %cst_16 = arith.constant 6.000000e+00 : f32
    %38 = vector.broadcast %cst_16 : f32 to vector<1x2x128xf32>
    %39 = arith.mulf %38, %37 : vector<1x2x128xf32>
    %40 = arith.subf %34, %39 : vector<1x2x128xf32>
    %cst_17 = arith.constant 1.000000e+00 : f32
    %41 = vector.broadcast %cst_17 : f32 to vector<1x2x128xf32>
    %42 = arith.subf %40, %41 : vector<1x2x128xf32>
    %cst_18 = arith.constant 5.000000e+00 : f32
    %43 = vector.broadcast %cst_18 : f32 to vector<1x2x128xf32>
    %44 = arith.subf %43, %40 : vector<1x2x128xf32>
    %45 = arith.minimumf %42, %44 : vector<1x2x128xf32>
    %cst_19 = arith.constant 0.000000e+00 : f32
    %cst_20 = arith.constant 1.000000e+00 : f32
    %46 = vector.broadcast %cst_19 : f32 to vector<1x2x128xf32>
    %47 = arith.maximumf %46, %45 : vector<1x2x128xf32>
    %48 = vector.broadcast %cst_20 : f32 to vector<1x2x128xf32>
    %49 = arith.minimumf %48, %47 : vector<1x2x128xf32>
    %50 = arith.mulf %13, %49 : vector<1x2x128xf32>
    %51 = arith.subf %10, %50 : vector<1x2x128xf32>
    %c0_21 = arith.constant 0 : index
    %c0_22 = arith.constant 0 : index
    %c0_23 = arith.constant 0 : index
    %c0_24 = arith.constant 0 : index
    %52 = vector.load %arg4[%c0_21, %c0_22, %c0_23, %c0_24] : memref<1x3x2x128xf32, #tpu.memory_space<vmem>>, vector<1x1x2x128xf32>
    %53 = vector.shape_cast %52 : vector<1x1x2x128xf32> to vector<1x2x128xf32>
    %54 = vector.shape_cast %51 : vector<1x2x128xf32> to vector<1x1x2x128xf32>
    tpu.vector_store %arg4[%c0_21, %c0_22, %c0_23, %c0_24], %54 {strides = array<i32>} : memref<1x3x2x128xf32, #tpu.memory_space<vmem>>, vector<1x1x2x128xf32>,
    %cst_25 = arith.constant 1.000000e+00 : f32
    %55 = vector.broadcast %cst_25 : f32 to vector<1x2x128xf32>
    %56 = arith.subf %55, %40 : vector<1x2x128xf32>
    %cst_26 = arith.constant 3.000000e+00 : f32
    %57 = vector.broadcast %cst_26 : f32 to vector<1x2x128xf32>
    %58 = arith.subf %40, %57 : vector<1x2x128xf32>
    %59 = arith.maximumf %56, %58 : vector<1x2x128xf32>
    %cst_27 = arith.constant 0.000000e+00 : f32
    %cst_28 = arith.constant 1.000000e+00 : f32
    %60 = vector.broadcast %cst_27 : f32 to vector<1x2x128xf32>
    %61 = arith.maximumf %60, %59 : vector<1x2x128xf32>
    %62 = vector.broadcast %cst_28 : f32 to vector<1x2x128xf32>
    %63 = arith.minimumf %62, %61 : vector<1x2x128xf32>
    %64 = arith.mulf %13, %63 : vector<1x2x128xf32>
    %65 = arith.subf %10, %64 : vector<1x2x128xf32>
    %c0_29 = arith.constant 0 : index
    %c1_30 = arith.constant 1 : index
    %c0_31 = arith.constant 0 : index
    %c0_32 = arith.constant 0 : index
    %66 = vector.load %arg4[%c0_29, %c1_30, %c0_31, %c0_32] : memref<1x3x2x128xf32, #tpu.memory_space<vmem>>, vector<1x1x2x128xf32>
    %67 = vector.shape_cast %66 : vector<1x1x2x128xf32> to vector<1x2x128xf32>
    %68 = vector.shape_cast %65 : vector<1x2x128xf32> to vector<1x1x2x128xf32>
    tpu.vector_store %arg4[%c0_29, %c1_30, %c0_31, %c0_32], %68 {strides = array<i32>} : memref<1x3x2x128xf32, #tpu.memory_space<vmem>>, vector<1x1x2x128xf32>,
    %cst_33 = arith.constant 3.000000e+00 : f32
    %69 = vector.broadcast %cst_33 : f32 to vector<1x2x128xf32>
    %70 = arith.subf %69, %40 : vector<1x2x128xf32>
    %cst_34 = arith.constant 5.000000e+00 : f32
    %71 = vector.broadcast %cst_34 : f32 to vector<1x2x128xf32>
    %72 = arith.subf %40, %71 : vector<1x2x128xf32>
    %73 = arith.maximumf %70, %72 : vector<1x2x128xf32>
    %cst_35 = arith.constant 0.000000e+00 : f32
    %cst_36 = arith.constant 1.000000e+00 : f32
    %74 = vector.broadcast %cst_35 : f32 to vector<1x2x128xf32>
    %75 = arith.maximumf %74, %73 : vector<1x2x128xf32>
    %76 = vector.broadcast %cst_36 : f32 to vector<1x2x128xf32>
    %77 = arith.minimumf %76, %75 : vector<1x2x128xf32>
    %78 = arith.mulf %13, %77 : vector<1x2x128xf32>
    %79 = arith.subf %10, %78 : vector<1x2x128xf32>
    %c0_37 = arith.constant 0 : index
    %c2_38 = arith.constant 2 : index
    %c0_39 = arith.constant 0 : index
    %c0_40 = arith.constant 0 : index
    %80 = vector.load %arg4[%c0_37, %c2_38, %c0_39, %c0_40] : memref<1x3x2x128xf32, #tpu.memory_space<vmem>>, vector<1x1x2x128xf32>
    %81 = vector.shape_cast %80 : vector<1x1x2x128xf32> to vector<1x2x128xf32>
    %82 = vector.shape_cast %79 : vector<1x2x128xf32> to vector<1x1x2x128xf32>
    tpu.vector_store %arg4[%c0_37, %c2_38, %c0_39, %c0_40], %82 {strides = array<i32>} : memref<1x3x2x128xf32, #tpu.memory_space<vmem>>, vector<1x1x2x128xf32>,
    return
  }
  func.func @transform_0(%arg0: i32, %arg1: i32) -> i32 {
    %c0_i32 = arith.constant 0 : i32
    %c0_i32_0 = arith.constant 0 : i32
    return %c0_i32 : i32
  }
  func.func @transform_1(%arg0: i32, %arg1: i32) -> (i32, i32, i32, i32) {
    %c0_i32 = arith.constant 0 : i32
    %c0_i32_0 = arith.constant 0 : i32
    %c0_i32_1 = arith.constant 0 : i32
    return %arg0, %c0_i32, %arg1, %c0_i32_0 : i32, i32, i32, i32
  }
  func.func @transform_2(%arg0: i32, %arg1: i32) -> (i32, i32, i32, i32) {
    %c0_i32 = arith.constant 0 : i32
    %c0_i32_0 = arith.constant 0 : i32
    %c0_i32_1 = arith.constant 0 : i32
    return %arg0, %c0_i32, %arg1, %c0_i32_0 : i32, i32, i32, i32
  }
}

</mosaic_0001>

<llo_original>
// kernel: tpu_custom_call.1
$region0: #{tpu_custom_call.1}
  #allocation0 [shape = 'u32[]', space=smem, size = 0x4, offset = 0x4, fixed_abs, tag = 'smem constant byte address 0x4 - core index']
  #allocation1 [shape = 'u32[144,128]{1,0:T(1,128)}', space=vmem, size = 0x12000, scoped, tag = 'internal scratch']
  #allocation2 [shape = 'f32[1]{0:T(128)S(6)}', space=smem, size = 0x200, scoped, tag = 'scoped memory for tpu_custom_call.1']
  %s0 = inlined_call_operand.<no memory space> [shape: f32[1], index: 0, kind: input, shape index: {}]
  %s1 = inlined_call_operand.hbm [shape: f32[2,3,2,128], index: 1, kind: input, shape index: {}]
  %s2 = inlined_call_operand.hbm [shape: f32[2,3,2,128], index: 2, kind: output, shape index: {}]
  %s3 = sld [smem:[#allocation0]]
  $region45: #{tpu_custom_call.1} parent=0
    _
  %s5 = ssub.s32 1, %s3
  %s6 = scalar_select 0, %s5, %s3
  %7 = sst [smem:[#allocation2]] %s0
  $region1: #{tpu_custom_call.1} parent=0
    #allocation3 [shape = 'u8[6144]{0}', space=vmem, size = 0x1800, scoped, tag = 'input window, operand 1']
    #allocation4 [shape = 's32[2]{0}', space=sflag, size = 0x8, scoped, tag = 'scoped memory for tpu_custom_call.1']
    #allocation5 [shape = 's32[2]{0}', space=sflag, size = 0x8, scoped, tag = 'scoped memory for tpu_custom_call.1']
    #allocation6 [shape = 'u8[6144]{0}', space=vmem, size = 0x1800, scoped, tag = 'output window, operand 0']
    %8 = vsyncpa [#allocation4], 0
    %s9 = scalar_lea.sflag [#allocation4], 1
    %10 = vsyncpa %s9, 0
    %11 = vsyncpa [#allocation5], 0
    %s12 = scalar_lea.sflag [#allocation5], 1
    %13 = vsyncpa %s12, 0
    loop: start=0, step=1, limit=4
    $region2: #{tpu_custom_call.1} parent=1 // loop_pre_header
      _
    $region3: #{tpu_custom_call.1} parent=1 // loop_header
      %s15 = sphi 0, %s19
      %p16 = scmp.ge.s32.totalorder %s15, 4
      %s22 = sphi 0, %s34
      %s23 = sphi 0, %s30
      %s24 = sphi 0, %s22
      %s25 = sphi 0, %s23
      %s26 = sphi 0, %s24
      %s27 = sphi 0, %s25
      %s35 = sphi 0, %s35
      %s37 = sphi 0, %s35
      %s38 = sphi 0, %s37
      %s52 = sphi 0, %s38
      %s60 = sphi 0, %s62
      %s63 = sphi 0, %s60
      %s64 = sphi 0, %s63
      %s80 = sphi 0, %s64
      %s88 = sphi 0, %s90
      %s91 = sphi 0, %s88
      %s92 = sphi 0, %s91
      %s108 = sphi 0, %s92
    $region4: #{tpu_custom_call.1} parent=1 // loop_header_branch
      %18 = sbr.rel (%p16) target = $region8
    $region5: #{tpu_custom_call.1} parent=1 // loop_body
      %s20 = ssub.s32 %s15, 1
      %s21 = ssub.s32 %s15, 2
      %s28 = sadd.s32 1, %s23
      %p29 = scmp.ge.s32.totalorder %s28, 1
      %s30 = scalar_select %p29, 0, %s28
      %s31 = sadd.s32 1, %s22
      %s32 = scalar_select %p29, %s31, %s22
      %p33 = scmp.ge.s32.totalorder %s32, 2
      %s34 = scalar_select %p33, 0, %s32
      %s36 = sadd.s32 %s35, 1
      %p39 = scmp.eq.s32.totalorder %s15, 1
      %p40 = scmp.ne.s32.totalorder %s35, %s37
      %p41 = scmp.eq.s32.totalorder %s15, 0
      %p42 = por %p40, %p41
      %p43 = scmp.ne.s32.totalorder %s35, %s37
      %p44 = scmp.eq.s32.totalorder %s20, 1
      %p45 = por %p43, %p44
      %p46 = scmp.ne.s32.totalorder %s37, %s38
      %p47 = scmp.eq.s32.totalorder %s20, 0
      %p48 = por %p46, %p47
      %p49 = scmp.ne.s32.totalorder %s37, %s38
      %p50 = scmp.eq.s32.totalorder %s21, 1
      %p51 = por %p49, %p50
      %p53 = scmp.ne.s32.totalorder %s38, %s52
      %p54 = scmp.eq.s32.totalorder %s21, 0
      %p55 = por %p53, %p54
      %s56 = ssub.s32 %s22, %s34
      %s57 = ssub.s32 %s23, %s30
      %s58 = sor.u32 %s56, %s57
      %p59 = scmp.eq.s32.totalorder %s58, 0
      %s61 = sadd.s32 %s60, 1
      %s62 = scalar_select %p59, %s60, %s61
      %p65 = pneg %p59
      %p66 = scmp.eq.s32.totalorder %s15, 1
      %p67 = por %p65, %p66
      %p68 = scmp.ne.s32.totalorder %s60, %s63
      %p69 = scmp.eq.s32.totalorder %s15, 0
      %p70 = por %p68, %p69
      %p71 = scmp.ne.s32.totalorder %s60, %s63
      %p72 = scmp.eq.s32.totalorder %s20, 1
      %p73 = por %p71, %p72
      %p74 = scmp.ne.s32.totalorder %s63, %s64
      %p75 = scmp.eq.s32.totalorder %s20, 0
      %p76 = por %p74, %p75
      %p77 = scmp.ne.s32.totalorder %s63, %s64
      %p78 = scmp.eq.s32.totalorder %s21, 1
      %p79 = por %p77, %p78
      %p81 = scmp.ne.s32.totalorder %s64, %s80
      %p82 = scmp.eq.s32.totalorder %s21, 0
      %p83 = por %p81, %p82
      %s84 = ssub.s32 %s22, %s34
      %s85 = ssub.s32 %s23, %s30
      %s86 = sor.u32 %s84, %s85
      %p87 = scmp.eq.s32.totalorder %s86, 0
      %s89 = sadd.s32 %s88, 1
      %s90 = scalar_select %p87, %s88, %s89
      %p93 = pneg %p87
      %p94 = scmp.eq.s32.totalorder %s15, 1
      %p95 = por %p93, %p94
      %p96 = scmp.ne.s32.totalorder %s88, %s91
      %p97 = scmp.eq.s32.totalorder %s15, 0
      %p98 = por %p96, %p97
      %p99 = scmp.ne.s32.totalorder %s88, %s91
      %p100 = scmp.eq.s32.totalorder %s20, 1
      %p101 = por %p99, %p100
      %p102 = scmp.ne.s32.totalorder %s91, %s92
      %p103 = scmp.eq.s32.totalorder %s20, 0
      %p104 = por %p102, %p103
      %p105 = scmp.ne.s32.totalorder %s91, %s92
      %p106 = scmp.eq.s32.totalorder %s21, 1
      %p107 = por %p105, %p106
      %p109 = scmp.ne.s32.totalorder %s92, %s108
      %p110 = scmp.eq.s32.totalorder %s21, 0
      %p111 = por %p109, %p110
      %p112 = scmp.le.s32.totalorder 1, %s15
      %p113 = scmp.lt.s32.totalorder %s15, 3
      %p114 = pnand %p112, %p113
      %p115 = pneg %p114
      // Predicated region
      $region9: #{tpu_custom_call.1} parent=5 // pred_check
        _
      $region10: #{tpu_custom_call.1} parent=5 // pred_check_branch
        %117 = sbr.rel (%p114) target = $region12
      $region11: #{tpu_custom_call.1} parent=5 // pred_region
        %s118 = ssub.s32 %s15, 1
        // Predicated region
        $region13: #{tpu_custom_call.1} parent=11 // pred_check
          %p119 = pneg %p48
        $region14: #{tpu_custom_call.1} parent=11 // pred_check_branch
          %121 = sbr.rel (%p119) target = $region16
        $region15: #{tpu_custom_call.1} parent=11 // pred_region
          _
        $region16: #{tpu_custom_call.1} parent=11 // pred_fallthru
          _
      $region12: #{tpu_custom_call.1} parent=5 // pred_fallthru
        _
      %p122 = scmp.lt.s32.totalorder %s15, 2
      // Predicated region
      $region17: #{tpu_custom_call.1} parent=5 // pred_check
        %p123 = pneg %p122
      $region18: #{tpu_custom_call.1} parent=5 // pred_check_branch
        %125 = sbr.rel (%p123) target = $region20
      $region19: #{tpu_custom_call.1} parent=5 // pred_region
        // Predicated region
        $region21: #{tpu_custom_call.1} parent=19 // pred_check
          %p126 = pneg %p70
        $region22: #{tpu_custom_call.1} parent=19 // pred_check_branch
          %128 = sbr.rel (%p126) target = $region24
        $region23: #{tpu_custom_call.1} parent=19 // pred_region
          %s129 = sand.u32 %s60, 1
          %s130 = scalar_lea.sflag [#allocation4], %s129
          %s131 = sand.u32 %s60, 1
          %s132 = smul.addr %s131, 6
          %s133 = scalar_lea.vmem [#allocation3], %s132
          %s135 = ssub.s32 96, 96
          %136 = vsyncadd %s130, %s135
          %s137 = smul.addr %s22, 3
          %s138 = sadd.s32 %s23, %s137
          %s139 = smul.addr %s138, 32
          %s140 = scalar_lea.hbm %s1, %s139
          %s141 = sshll.u32 %s133, 4
          %s142 = int_to_ptr.vmem [resolvable:$true] %s141
          %147 = dma.hbm_to_vmem [thread:$0]  %s140, 96, %s142, %s130, 32, 32, 2
        $region24: #{tpu_custom_call.1} parent=19 // pred_fallthru
          _
      $region20: #{tpu_custom_call.1} parent=5 // pred_fallthru
        _
      %p148 = scmp.le.s32.totalorder 1, %s15
      %p149 = scmp.lt.s32.totalorder %s15, 3
      %p150 = pnand %p148, %p149
      %p151 = pneg %p150
      // Predicated region
      $region25: #{tpu_custom_call.1} parent=5 // pred_check
        _
      $region26: #{tpu_custom_call.1} parent=5 // pred_check_branch
        %153 = sbr.rel (%p150) target = $region28
      $region27: #{tpu_custom_call.1} parent=5 // pred_region
        %s154 = ssub.s32 %s15, 1
        %s155 = sand.u32 %s63, 1
        %s156 = scalar_lea.sflag [#allocation4], %s155
        %s157 = sand.u32 %s63, 1
        %s158 = smul.addr %s157, 6
        %s159 = scalar_lea.vmem [#allocation3], %s158
        // Predicated region
        $region29: #{tpu_custom_call.1} parent=27 // pred_check
          %p160 = pneg %p76
        $region30: #{tpu_custom_call.1} parent=27 // pred_check_branch
          %162 = sbr.rel (%p160) target = $region32
        $region31: #{tpu_custom_call.1} parent=27 // pred_region
          %163 = dma.done %s156, 96
        $region32: #{tpu_custom_call.1} parent=27 // pred_fallthru
          _
        %p164 = pneg %p48
        %p165 = pneg %p45
        %s166 = sand.u32 %s63, 1
        %s167 = scalar_lea.sflag [#allocation4], %s166
        %s168 = sand.u32 %s63, 1
        %s169 = smul.addr %s168, 6
        %s170 = scalar_lea.vmem [#allocation3], %s169
        %p171 = pneg %p76
        %p172 = pneg %p73
        %p173 = pneg %p104
        %p174 = pneg %p101
        %s175 = sand.u32 %s91, 1
        %s176 = scalar_lea.sflag [#allocation5], %s175
        %s177 = sand.u32 %s91, 1
        %s178 = smul.addr %s177, 6
        %s179 = scalar_lea.vmem [#allocation6], %s178
        %s180 = sld [smem:[#allocation2]]
        %s181 = smul.f32 %s180, 6.0
        %s182 = sadd.f32 %s181, 6.0
        %v183 = vld [vmem:[%s159] sm:$0x3]
        %s184 = scalar_lea.vmem %s159, 2 [#allocation3]
        %v185 = vld [vmem:[%s184] sm:$0x3]
        %s186 = scalar_lea.vmem %s159, 4 [#allocation3]
        %v187 = vld [vmem:[%s186] sm:$0x3]
        %v188 = vmax.f32 %v183, %v185
        %v189 = vmax.f32 %v188, %v187
        %v190 = vmin.f32 %v183, %v185
        %v191 = vmin.f32 %v190, %v187
        %v192 = vsub.f32 %v189, %v191
        %vm193 = vcmp.eq.f32.partialorder %v192, 0.0
        %v194 = vsel %vm193, 1.0, %v192
        %v195 = vrcp.pop %v194
        %vm196 = vcmp.eq.f32.partialorder %v189, %v183
        %vm197 = vcmp.eq.f32.partialorder %v189, %v185
        %v198 = vsub.f32 %v185, %v187
        %v199 = vmul.f32 %v198, %v195
        %v200 = vsub.f32 %v187, %v183
        %v201 = vmul.f32 %v200, %v195
        %v202 = vadd.f32 %v201, 2.0
        %v203 = vsub.f32 %v183, %v185
        %v204 = vmul.f32 %v203, %v195
        %v205 = vadd.f32 %v204, 4.0
        %v206 = vsel %vm197, %v202, %v205
        %v207 = vsel %vm196, %v199, %v206
        %v208 = vstv %s182
        %v209 = vadd.f32 %v207, %v208
        %v210 = vmul.f32 %v209, 0.16666667
        %v211 = vfloor.f32 %v210
        %v212 = vmul.f32 %v211, 6.0
        %v213 = vsub.f32 %v209, %v212
        %v214 = vsub.f32 %v213, 1.0
        %v215 = vsub.f32 5.0, %v213
        %v216 = vmin.f32 %v214, %v215
        %v217 = vmax.f32 %v216, 0.0
        %v218 = vmin.f32 %v217, 1.0
        %v219 = vmul.f32 %v192, %v218
        %v220 = vsub.f32 %v189, %v219
        %221 = vst [vmem:[%s179] sm:$0x3] %v220
        %v222 = vsub.f32 1.0, %v213
        %v223 = vsub.f32 %v213, 3.0
        %v224 = vmax.f32 %v222, %v223
        %v225 = vmax.f32 %v224, 0.0
        %v226 = vmin.f32 %v225, 1.0
        %v227 = vmul.f32 %v192, %v226
        %v228 = vsub.f32 %v189, %v227
        %s229 = scalar_lea.vmem %s179, 2 [#allocation6]
        %230 = vst [vmem:[%s229] sm:$0x3] %v228
        %v231 = vsub.f32 3.0, %v213
        %v232 = vsub.f32 %v213, 5.0
        %v233 = vmax.f32 %v231, %v232
        %v234 = vmax.f32 %v233, 0.0
        %v235 = vmin.f32 %v234, 1.0
        %v236 = vmul.f32 %v192, %v235
        %v237 = vsub.f32 %v189, %v236
        %s238 = scalar_lea.vmem %s179, 4 [#allocation6]
        %239 = vst [vmem:[%s238] sm:$0x3] %v237
        %s240 = sand.u32 %s91, 1
        %s241 = scalar_lea.sflag [#allocation5], %s240
        %s242 = sand.u32 %s91, 1
        %s243 = smul.addr %s242, 6
        %s244 = scalar_lea.vmem [#allocation6], %s243
        // Predicated region
        $region33: #{tpu_custom_call.1} parent=27 // pred_check
          %p245 = pneg %p101
        $region34: #{tpu_custom_call.1} parent=27 // pred_check_branch
          %247 = sbr.rel (%p245) target = $region36
        $region35: #{tpu_custom_call.1} parent=27 // pred_region
          %s249 = ssub.s32 96, 96
          %250 = vsyncadd %s241, %s249
          %s251 = smul.addr %s24, 3
          %s252 = sadd.s32 %s25, %s251
          %s253 = smul.addr %s252, 32
          %s254 = scalar_lea.hbm %s2, %s253
          %s255 = sshll.u32 %s244, 4
          %s256 = int_to_ptr.vmem [resolvable:$true] %s255
          %261 = dma.vmem_to_hbm [thread:$0]  %s256, 96, %s254, %s241, 32, 32, 2
        $region36: #{tpu_custom_call.1} parent=27 // pred_fallthru
          _
      $region28: #{tpu_custom_call.1} parent=5 // pred_fallthru
        _
      %p262 = scmp.le.s32.totalorder 2, %s15
      // Predicated region
      $region37: #{tpu_custom_call.1} parent=5 // pred_check
        %p263 = pneg %p262
      $region38: #{tpu_custom_call.1} parent=5 // pred_check_branch
        %265 = sbr.rel (%p263) target = $region40
      $region39: #{tpu_custom_call.1} parent=5 // pred_region
        %s266 = ssub.s32 %s15, 2
        // Predicated region
        $region41: #{tpu_custom_call.1} parent=39 // pred_check
          %p267 = pneg %p107
        $region42: #{tpu_custom_call.1} parent=39 // pred_check_branch
          %269 = sbr.rel (%p267) target = $region44
        $region43: #{tpu_custom_call.1} parent=39 // pred_region
          %s270 = sand.u32 %s92, 1
          %s271 = scalar_lea.sflag [#allocation5], %s270
          %s272 = sand.u32 %s92, 1
          %s273 = smul.addr %s272, 6
          %s274 = scalar_lea.vmem [#allocation6], %s273
          %275 = dma.done %s271, 96
        $region44: #{tpu_custom_call.1} parent=39 // pred_fallthru
          _
      $region40: #{tpu_custom_call.1} parent=5 // pred_fallthru
        _
    $region6: #{tpu_custom_call.1} parent=1 // loop_footer
      %s19 = sadd.s32 1, %s15
    $region7: #{tpu_custom_call.1} parent=1 // loop_footer_branch
      %14 = sbr.rel target = $region3
    $region8: #{tpu_custom_call.1} parent=1 // loop_exit
      _
    %276 = vsyncpa [#allocation4], 1
    %s277 = scalar_lea.sflag [#allocation4], 1
    %278 = vsyncpa %s277, 1
    %279 = vsyncpa [#allocation5], 1
    %s280 = scalar_lea.sflag [#allocation5], 1
    %281 = vsyncpa %s280, 1

</llo_original>
